<compile_context>
chip_gen: v6e
topology: v6e:2x2x1
jax: 0.10.0
libtpu: 0.0.40
codegen_flags: <defaults>
</compile_context>

<pallas_src>
import math

import jax
import jax.numpy as jnp
from jax.experimental import pallas as pl
from jax.experimental.pallas import tpu as pltpu

_LANE = 128


def _copy_kernel(x_ref, o_ref):
    # Pure data movement: the batch-prefix slice is expressed by the grid /
    # BlockSpec index_map, so this is a single dense VMEM copy per grid step.
    o_ref[...] = x_ref[...]


def _is_two_core_chip() -> bool:
    """True on parts with 2 TensorCores per chip (v4 / v5p / v7x)."""
    try:
        kind = jax.devices()[0].device_kind.lower()
    except Exception:
        return False
    return any(tag in kind for tag in ("v7", "v5p", "v4"))


def mask_batch(x: jax.Array, count: int) -> jax.Array:
    """MaskBatch.forward: x[:count] if count > 0 else x (with `other` == identity)."""
    # TODO(synk): MaskBatch forwards the sliced batch to `self.other`, an
    # externally attached submodule never defined in the spec; treated as identity.
    if count <= 0:
        return x

    n = x.shape[0]
    m = min(count, n)
    if m == n:
        # count >= batch size: x[:count] is the whole tensor -> no copy needed.
        return x

    item_shape = x.shape[1:]
    feat = math.prod(item_shape) if item_shape else 1
    itemsize = jnp.dtype(x.dtype).itemsize

    two_core = _is_two_core_chip()
    # Per-block cap (one buffer). With input + output each double-buffered the
    # VMEM footprint is ~4x this, kept under the explicit scoped limit below
    # (and well under v7x's 64 MiB physical VMEM).
    block_cap = (6 << 20) if two_core else (8 << 20)
    vmem_limit = (32 << 20) if two_core else (64 << 20)

    total_in = n * feat
    total_out = m * feat

    if total_out % _LANE == 0 and total_in % _LANE == 0 and total_out // _LANE >= 8:
        # ---- Path A: lane-dense copy of the flat contiguous prefix. ----
        # x[:m] is the first m*feat elements of x in row-major order, so the
        # copy may legally cross image/batch boundaries; folding everything
        # into (rows, 128) keeps every store an unmasked full-lane vst
        # regardless of the per-image feature size.
        r_in = total_in // _LANE
        r_out = total_out // _LANE
        view = x.reshape(r_in, _LANE)  # free: contiguous reshape

        tr = min(r_out, max(8, block_cap // (_LANE * itemsize)))
        tr = max(8, (tr // 8) * 8)  # sublane (8) multiple
        if two_core and r_out >= 4 * 8:
            # >= 4 grid steps (>= 2 per TensorCore) so each core's
            # HBM->VMEM prefetch / copy / writeback overlap.
            quarter = ((-(-r_out // 4)) + 7) // 8 * 8
            tr = min(tr, quarter)
            steps = -(-r_out // tr)
            if steps > 1 and steps % 2 == 1:  # best-effort: avoid 2/1 core imbalance
                cand = ((-(-r_out // (steps + 1))) + 7) // 8 * 8
                if cand >= 8 and (-(-r_out // cand)) % 2 == 0:
                    tr = cand

        grid = (pl.cdiv(r_out, tr),)
        in_block = pl.BlockSpec((tr, _LANE), lambda i: (i, 0))
        out_block = pl.BlockSpec((tr, _LANE), lambda i: (i, 0))
        out_shape = jax.ShapeDtypeStruct((r_out, _LANE), x.dtype)
    elif x.ndim >= 2 and feat > 0 and m > 0:
        # ---- Path B: per-image tiling (feature volume not 128-friendly). ----
        # Block spans the full trailing dims (always legal); batch dim tiled.
        lanes = x.shape[-1]
        rows = feat // lanes
        view = x.reshape(n, rows, lanes)
        bytes_per_item = feat * itemsize
        tb = max(1, min(m, block_cap // max(1, bytes_per_item)))
        if two_core and m >= 4:
            tb = min(tb, pl.cdiv(m, 4))  # >= 4 steps for the two TensorCores
        grid = (pl.cdiv(m, tb),)
        in_block = pl.BlockSpec((tb, rows, lanes), lambda i: (i, 0, 0))
        out_block = pl.BlockSpec((tb, rows, lanes), lambda i: (i, 0, 0))
        out_shape = jax.ShapeDtypeStruct((m, rows, lanes), x.dtype)
    else:
        # ---- Path C: 1-D / degenerate shapes -> trivial static slice. ----
        return x[:m]

    out = pl.pallas_call(
        _copy_kernel,
        out_shape=out_shape,
        grid_spec=pltpu.PrefetchScalarGridSpec(
            num_scalar_prefetch=0,
            grid=grid,
            in_specs=[in_block],
            out_specs=out_block,
        ),
        compiler_params=pltpu.CompilerParams(
            dimension_semantics=("parallel",),
            vmem_limit_bytes=vmem_limit,
        ),
        cost_estimate=pl.CostEstimate(
            flops=0,
            transcendentals=0,
            bytes_accessed=2 * total_out * itemsize,
        ),
    )(view)
    return out.reshape((m,) + item_shape)


if __name__ == "__main__":
    key = jax.random.PRNGKey(0)
    N, C, H, W = 2, 4, 16, 16
    x = jax.random.normal(key, (N, C, H, W), dtype=jnp.float32)

    # count > 0: take the first `count` batch items (lane-dense Path A kernel).
    COUNT = 1
    out = jax.block_until_ready(mask_batch(x, COUNT))
    assert out.shape == (COUNT, C, H, W), out.shape
    assert jnp.array_equal(out, x[:COUNT])

    # count <= 0: pass-through, identical to the input.
    out_full = jax.block_until_ready(mask_batch(x, -1))
    assert out_full.shape == x.shape
    assert jnp.array_equal(out_full, x)

    # count >= batch size: identity, zero data movement.
    out_all = jax.block_until_ready(mask_batch(x, 10))
    assert out_all.shape == x.shape
    assert jnp.array_equal(out_all, x)

    # Non-128-divisible feature volume exercises the per-image fallback (Path B).
    x2 = jax.random.normal(jax.random.PRNGKey(1), (4, 3, 5, 24), dtype=jnp.float32)
    out2 = jax.block_until_ready(mask_batch(x2, 3))
    assert out2.shape == (3, 3, 5, 24), out2.shape
    assert jnp.array_equal(out2, x2[:3])

    print("KERNEL_OK")
</pallas_src>

<mosaic_0001>
module attributes {stable_mosaic.version = 11 : i64} {
  func.func @_copy_kernel(%arg0: i32, %arg1: memref<8x128xf32, #tpu.memory_space<vmem>>, %arg2: memref<8x128xf32, #tpu.memory_space<vmem>>) attributes {dimension_semantics = [#tpu.dimension_semantics<parallel>], iteration_bounds = array<i64: 1>, scalar_prefetch = 0 : i64, scratch_operands = 0 : i64, tpu.core_type = #tpu.core_type<tc>, window_params = [{transform_indices = @transform_0, window_bounds = array<i64: 8, 128>}, {transform_indices = @transform_1, window_bounds = array<i64: 8, 128>}]} {
    %c0 = arith.constant 0 : index
    %c0_0 = arith.constant 0 : index
    %0 = vector.load %arg1[%c0, %c0_0] : memref<8x128xf32, #tpu.memory_space<vmem>>, vector<8x128xf32>
    %c0_1 = arith.constant 0 : index
    %c0_2 = arith.constant 0 : index
    %1 = vector.load %arg2[%c0_1, %c0_2] : memref<8x128xf32, #tpu.memory_space<vmem>>, vector<8x128xf32>
    tpu.vector_store %arg2[%c0_1, %c0_2], %0 {strides = array<i32>} : memref<8x128xf32, #tpu.memory_space<vmem>>, vector<8x128xf32>,
    return
  }
  func.func @transform_0(%arg0: i32) -> (i32, i32) {
    %c0_i32 = arith.constant 0 : i32
    %c0_i32_0 = arith.constant 0 : i32
    return %arg0, %c0_i32 : i32, i32
  }
  func.func @transform_1(%arg0: i32) -> (i32, i32) {
    %c0_i32 = arith.constant 0 : i32
    %c0_i32_0 = arith.constant 0 : i32
    return %arg0, %c0_i32 : i32, i32
  }
}

</mosaic_0001>

<llo_original>
// kernel: tpu_custom_call.1
$region0: #{tpu_custom_call.1}
  #allocation0 [shape = 'u32[]', space=smem, size = 0x4, offset = 0x4, fixed_abs, tag = 'smem constant byte address 0x4 - core index']
  #allocation1 [shape = 'u32[144,128]{1,0:T(1,128)}', space=vmem, size = 0x12000, scoped, tag = 'internal scratch']
  %s0 = inlined_call_operand.hbm [shape: f32[16,128], index: 0, kind: input, shape index: {}]
  %s1 = inlined_call_operand.hbm [shape: f32[8,128], index: 1, kind: output, shape index: {}]
  %s2 = sld [smem:[#allocation0]]
  $region18: #{tpu_custom_call.1} parent=0
    _
  %s4 = ssub.s32 1, %s2
  %s5 = scalar_select 0, %s4, %s2
  $region1: #{tpu_custom_call.1} parent=0
    #allocation2 [shape = 'u8[4096]{0}', space=vmem, size = 0x1000, scoped, tag = 'input window, operand 0, single buffered']
    #allocation3 [shape = 's32[1]{0}', space=sflag, size = 0x4, scoped, tag = 'scoped memory for tpu_custom_call.1']
    #allocation4 [shape = 's32[1]{0}', space=sflag, size = 0x4, scoped, tag = 'scoped memory for tpu_custom_call.1']
    #allocation5 [shape = 'u8[4096]{0}', space=vmem, size = 0x1000, scoped, tag = 'output window, operand 0, single buffered']
    %6 = vsyncpa [#allocation3], 0
    %7 = vsyncpa [#allocation4], 0
    // Predicated region
    $region2: #{tpu_custom_call.1} parent=1 // pred_check
      _
    $region3: #{tpu_custom_call.1} parent=1 // pred_check_branch
      %9 = sbr.rel (0) target = $region5
    $region4: #{tpu_custom_call.1} parent=1 // pred_region
      %s11 = ssub.s32 128, 128
      %12 = vsyncadd [#allocation3], %s11
      %s14 = sshll.u32 [#allocation2], 4
      %s15 = int_to_ptr.vmem [resolvable:$true] %s14
      %17 = dma.hbm_to_vmem [thread:$0]  %s0, 128, %s15, [#allocation3]
    $region5: #{tpu_custom_call.1} parent=1 // pred_fallthru
      _
    // Predicated region
    $region6: #{tpu_custom_call.1} parent=1 // pred_check
      _
    $region7: #{tpu_custom_call.1} parent=1 // pred_check_branch
      %19 = sbr.rel (0) target = $region9
    $region8: #{tpu_custom_call.1} parent=1 // pred_region
      %20 = dma.done [#allocation3], 128
    $region9: #{tpu_custom_call.1} parent=1 // pred_fallthru
      _
    %v21 = vld [vmem:[#allocation2] sm:$0xff]
    %22 = vst [vmem:[#allocation5] sm:$0xff] %v21
    // Predicated region
    $region10: #{tpu_custom_call.1} parent=1 // pred_check
      _
    $region11: #{tpu_custom_call.1} parent=1 // pred_check_branch
      %24 = sbr.rel (0) target = $region13
    $region12: #{tpu_custom_call.1} parent=1 // pred_region
      %s26 = ssub.s32 128, 128
      %27 = vsyncadd [#allocation4], %s26
      %s29 = sshll.u32 [#allocation5], 4
      %s30 = int_to_ptr.vmem [resolvable:$true] %s29
      %32 = dma.vmem_to_hbm [thread:$0]  %s30, 128, %s1, [#allocation4]
    $region13: #{tpu_custom_call.1} parent=1 // pred_fallthru
      _
    // Predicated region
    $region14: #{tpu_custom_call.1} parent=1 // pred_check
      _
    $region15: #{tpu_custom_call.1} parent=1 // pred_check_branch
      %34 = sbr.rel (0) target = $region17
    $region16: #{tpu_custom_call.1} parent=1 // pred_region
      %35 = dma.done [#allocation4], 128
    $region17: #{tpu_custom_call.1} parent=1 // pred_fallthru
      _
    %36 = vsyncpa [#allocation3], 1
    %37 = vsyncpa [#allocation4], 1

</llo_original>
